<compile_context>
chip_gen: v6e
topology: v6e:2x2x1
jax: 0.10.0
libtpu: 0.0.40
codegen_flags: <defaults>
</compile_context>

<pallas_src>
import jax
import jax.numpy as jnp
from jax.experimental import pallas as pl
from jax.experimental.pallas import tpu as pltpu


def _round_up(n, m):
    return ((n + m - 1) // m) * m


# --------------------------------------------------------------------------
# Kernel: full 3-layer MLP for one batch tile, everything resident in VMEM.
# --------------------------------------------------------------------------
def mlp_kernel(x_ref, w1_ref, b1_ref, w2_ref, b2_ref, w3_ref, b3_ref, o_ref):
    cdt = w1_ref.dtype                              # matmul input dtype (bf16)

    x = x_ref[...].astype(cdt)                      # (TB, D)

    # Layer 1: MXU matmul (bf16 in, f32 accumulate); bias + ReLU in f32 (VPU).
    h = jnp.dot(x, w1_ref[...], preferred_element_type=jnp.float32)
    h = jnp.maximum(h + b1_ref[...], 0.0)           # (TB, Hp)

    # Layer 2.
    h = jnp.dot(h.astype(cdt), w2_ref[...], preferred_element_type=jnp.float32)
    h = jnp.maximum(h + b2_ref[...], 0.0)           # (TB, Hp)

    # Layer 3 (output width 1): contract the (1, Hp) W3 row against h over the
    # hidden dim so the result is produced lane-dense as (1, TB) — avoids both
    # a near-empty (TB, 1) MXU output column and masked single-lane stores.
    out_row = jax.lax.dot_general(
        w3_ref[...], h.astype(cdt),
        dimension_numbers=(((1,), (1,)), ((), ())),
        preferred_element_type=jnp.float32)         # (1, TB)
    out_row = out_row + b3_ref[...]                 # (1, 1) broadcasts

    o_ref[...] = out_row.reshape(o_ref.shape).astype(o_ref.dtype)  # (1, 1, TB)


# --------------------------------------------------------------------------
# Wrapper: grid over batch, resident weights, lane-dense output.
# --------------------------------------------------------------------------
def mlp_net(x, prepped, *, block_b=1024):
    """x: (B, data_dim) float32. prepped: output of prepare_params()."""
    B, D = x.shape
    W1, b1 = prepped["W1"], prepped["b1"]
    W2, b2 = prepped["W2"], prepped["b2"]
    w3, b3 = prepped["W3"], prepped["b3"]
    Dp, Hp = W1.shape
    assert Dp == D, (Dp, D)
    assert block_b % 8 == 0

    # Batch tile (multiple of 8 sublanes); pad batch to a whole number of tiles.
    TB = min(block_b, _round_up(B, 8))
    B_pad = _round_up(B, TB)
    if B_pad != B:
        x = jnp.pad(x, ((0, B_pad - B), (0, 0)))
    nb = B_pad // TB

    flops = int(2 * B_pad * (D * Hp + Hp * Hp + Hp))
    bytes_accessed = int(
        x.size * x.dtype.itemsize                       # stream x in
        + B_pad * x.dtype.itemsize                      # stream out
        + sum(a.size * a.dtype.itemsize for a in (W1, b1, W2, b2, w3, b3)))

    out3 = pl.pallas_call(
        mlp_kernel,
        out_shape=jax.ShapeDtypeStruct((nb, 1, TB), x.dtype),
        grid=(nb,),
        in_specs=[
            # x: streamed per batch tile (double-buffered by the pipeline).
            pl.BlockSpec((TB, D), lambda i: (i, 0)),
            # Weights / biases: constant block index -> stay VMEM-resident.
            pl.BlockSpec((D, Hp), lambda i: (0, 0)),    # W1 (bf16)
            pl.BlockSpec((1, Hp), lambda i: (0, 0)),    # b1 (f32)
            pl.BlockSpec((Hp, Hp), lambda i: (0, 0)),   # W2 (bf16)
            pl.BlockSpec((1, Hp), lambda i: (0, 0)),    # b2 (f32)
            pl.BlockSpec((1, Hp), lambda i: (0, 0)),    # W3 as (1, Hp) row
            pl.BlockSpec((1, 1), lambda i: (0, 0)),     # b3 scalar (f32)
        ],
        # Lane-dense output: batch tile lives along lanes.
        out_specs=pl.BlockSpec((1, 1, TB), lambda i: (i, 0, 0)),
        compiler_params=pltpu.CompilerParams(
            dimension_semantics=("parallel",)),         # megacore on v7x
        cost_estimate=pl.CostEstimate(
            flops=flops, transcendentals=0, bytes_accessed=bytes_accessed),
    )(x, W1, b1, W2, b2, w3, b3)

    return out3.reshape(B_pad)[:B].reshape(B, 1)


# --------------------------------------------------------------------------
# Parameter init (PyTorch-style) + one-time prep (pad + cast) for the kernel.
# --------------------------------------------------------------------------
def init_params(key, data_dim, hidden_dim, dtype=jnp.float32):
    """PyTorch nn.Linear init: uniform(-1/sqrt(fan_in), 1/sqrt(fan_in))."""
    ks = jax.random.split(key, 6)

    def lin(kw, kb, fan_in, fan_out):
        bound = 1.0 / jnp.sqrt(jnp.asarray(fan_in, dtype))
        W = jax.random.uniform(kw, (fan_in, fan_out), dtype, -bound, bound)
        b = jax.random.uniform(kb, (1, fan_out), dtype, -bound, bound)
        return W, b

    W1, b1 = lin(ks[0], ks[1], data_dim, hidden_dim)
    W2, b2 = lin(ks[2], ks[3], hidden_dim, hidden_dim)
    W3, b3 = lin(ks[4], ks[5], hidden_dim, 1)
    return {"W1": W1, "b1": b1, "W2": W2, "b2": b2, "W3": W3, "b3": b3}


def prepare_params(params, compute_dtype=jnp.bfloat16, lane_multiple=128):
    """Zero-pad the hidden dim to a lane/MXU-friendly multiple, cast matmul
    weights to `compute_dtype`, keep biases in f32, store W3 as a (1, Hp) row
    and b3 as a (1, 1) scalar.  Zero padding is numerically inert."""
    W1, b1 = params["W1"], params["b1"]
    W2, b2 = params["W2"], params["b2"]
    W3, b3 = params["W3"], params["b3"]
    D, H = W1.shape
    Hp = _round_up(H, lane_multiple)
    ph = Hp - H
    return {
        "W1": jnp.pad(W1, ((0, 0), (0, ph))).astype(compute_dtype),
        "b1": jnp.pad(b1, ((0, 0), (0, ph))).astype(jnp.float32),
        "W2": jnp.pad(W2, ((0, ph), (0, ph))).astype(compute_dtype),
        "b2": jnp.pad(b2, ((0, 0), (0, ph))).astype(jnp.float32),
        "W3": jnp.pad(W3.reshape(1, H), ((0, 0), (0, ph))).astype(compute_dtype),
        "b3": b3.reshape(1, 1).astype(jnp.float32),
    }


# --------------------------------------------------------------------------
# Pure-JAX references.
# --------------------------------------------------------------------------
def mlp_ref(x, p, compute_dtype=None):
    """compute_dtype=None -> pure f32; otherwise mimics the kernel's matmul
    input cast (bf16 inputs, f32 accumulation)."""
    def dot(a, w):
        if compute_dtype is not None:
            a, w = a.astype(compute_dtype), w.astype(compute_dtype)
        return jnp.dot(a, w, preferred_element_type=jnp.float32)

    h = jnp.maximum(dot(x, p["W1"]) + p["b1"], 0.0)
    h = jnp.maximum(dot(h, p["W2"]) + p["b2"], 0.0)
    return dot(h, p["W3"]) + p["b3"]


if __name__ == "__main__":
    data_dim, hidden_dim, batch = 4, 32, 8

    key = jax.random.PRNGKey(0)
    kx, kp = jax.random.split(key)
    x = jax.random.normal(kx, (batch, data_dim), jnp.float32)
    params = init_params(kp, data_dim, hidden_dim)

    prepped = prepare_params(params, compute_dtype=jnp.bfloat16)
    out = jax.block_until_ready(mlp_net(x, prepped))
    assert out.shape == (batch, 1), out.shape

    # Exact-semantics check against a reference that applies the same bf16
    # matmul-input casts (tight tolerance).
    ref_matched = mlp_ref(x, params, compute_dtype=jnp.bfloat16)
    assert jnp.allclose(out, ref_matched, atol=2e-3, rtol=2e-3), (
        float(jnp.max(jnp.abs(out - ref_matched))))

    # Sanity check against the pure-f32 PyTorch-equivalent forward pass
    # (looser tolerance because matmul inputs are bf16).
    ref_f32 = mlp_ref(x, params)
    assert jnp.allclose(out, ref_f32, atol=1e-1, rtol=1e-1), (
        float(jnp.max(jnp.abs(out - ref_f32))))

    print("KERNEL_OK")
</pallas_src>

<mosaic_0001>
module attributes {stable_mosaic.version = 11 : i64} {
  func.func @mlp_kernel(%arg0: i32, %arg1: memref<8x4xf32, #tpu.memory_space<vmem>>, %arg2: memref<4x128xbf16, #tpu.memory_space<vmem>>, %arg3: memref<1x128xf32, #tpu.memory_space<vmem>>, %arg4: memref<128x128xbf16, #tpu.memory_space<vmem>>, %arg5: memref<1x128xf32, #tpu.memory_space<vmem>>, %arg6: memref<1x128xbf16, #tpu.memory_space<vmem>>, %arg7: memref<1x1xf32, #tpu.memory_space<vmem>>, %arg8: memref<1x1x8xf32, #tpu.memory_space<vmem>>) attributes {dimension_semantics = [#tpu.dimension_semantics<parallel>], iteration_bounds = array<i64: 1>, scalar_prefetch = 0 : i64, scratch_operands = 0 : i64, tpu.core_type = #tpu.core_type<tc>, window_params = [{transform_indices = @transform_0, window_bounds = array<i64: 8, 4>}, {pipeline_mode = #tpu.pipeline_mode<synchronous>, transform_indices = @transform_1, window_bounds = array<i64: 4, 128>}, {pipeline_mode = #tpu.pipeline_mode<synchronous>, transform_indices = @transform_2, window_bounds = array<i64: 1, 128>}, {pipeline_mode = #tpu.pipeline_mode<synchronous>, transform_indices = @transform_3, window_bounds = array<i64: 128, 128>}, {pipeline_mode = #tpu.pipeline_mode<synchronous>, transform_indices = @transform_4, window_bounds = array<i64: 1, 128>}, {pipeline_mode = #tpu.pipeline_mode<synchronous>, transform_indices = @transform_5, window_bounds = array<i64: 1, 128>}, {pipeline_mode = #tpu.pipeline_mode<synchronous>, transform_indices = @transform_6, window_bounds = array<i64: 1, 1>}, {transform_indices = @transform_7, window_bounds = array<i64: 1, 1, 8>}]} {
    %c0 = arith.constant 0 : index
    %c0_0 = arith.constant 0 : index
    %0 = vector.load %arg1[%c0, %c0_0] : memref<8x4xf32, #tpu.memory_space<vmem>>, vector<8x4xf32>
    %1 = arith.truncf %0 : vector<8x4xf32> to vector<8x4xbf16>
    %c0_1 = arith.constant 0 : index
    %c0_2 = arith.constant 0 : index
    %2 = vector.load %arg2[%c0_1, %c0_2] : memref<4x128xbf16, #tpu.memory_space<vmem>>, vector<4x128xbf16>
    %cst = arith.constant dense<0.000000e+00> : vector<8x128xf32>
    %3 = tpu.matmul %1, %2, %cst {dimension_numbers = #tpu.dot_dimension_numbers<[1], [0], [0], [1], [0, 0, 1, 1], [], []>} : vector<8x4xbf16>, vector<4x128xbf16>, vector<8x128xf32> -> vector<8x128xf32>
    %c0_3 = arith.constant 0 : index
    %c0_4 = arith.constant 0 : index
    %4 = vector.load %arg3[%c0_3, %c0_4] : memref<1x128xf32, #tpu.memory_space<vmem>>, vector<1x128xf32>
    %5 = vector.broadcast %4 : vector<1x128xf32> to vector<8x128xf32>
    %6 = arith.addf %3, %5 : vector<8x128xf32>
    %cst_5 = arith.constant 0.000000e+00 : f32
    %7 = vector.broadcast %cst_5 : f32 to vector<8x128xf32>
    %8 = arith.maximumf %6, %7 : vector<8x128xf32>
    %9 = arith.truncf %8 : vector<8x128xf32> to vector<8x128xbf16>
    %c0_6 = arith.constant 0 : index
    %c0_7 = arith.constant 0 : index
    %10 = vector.load %arg4[%c0_6, %c0_7] : memref<128x128xbf16, #tpu.memory_space<vmem>>, vector<128x128xbf16>
    %cst_8 = arith.constant dense<0.000000e+00> : vector<8x128xf32>
    %11 = tpu.matmul %9, %10, %cst_8 {dimension_numbers = #tpu.dot_dimension_numbers<[1], [0], [0], [1], [0, 0, 1, 1], [], []>} : vector<8x128xbf16>, vector<128x128xbf16>, vector<8x128xf32> -> vector<8x128xf32>
    %c0_9 = arith.constant 0 : index
    %c0_10 = arith.constant 0 : index
    %12 = vector.load %arg5[%c0_9, %c0_10] : memref<1x128xf32, #tpu.memory_space<vmem>>, vector<1x128xf32>
    %13 = vector.broadcast %12 : vector<1x128xf32> to vector<8x128xf32>
    %14 = arith.addf %11, %13 : vector<8x128xf32>
    %cst_11 = arith.constant 0.000000e+00 : f32
    %15 = vector.broadcast %cst_11 : f32 to vector<8x128xf32>
    %16 = arith.maximumf %14, %15 : vector<8x128xf32>
    %c0_12 = arith.constant 0 : index
    %c0_13 = arith.constant 0 : index
    %17 = vector.load %arg6[%c0_12, %c0_13] : memref<1x128xbf16, #tpu.memory_space<vmem>>, vector<1x128xbf16>
    %18 = arith.truncf %16 : vector<8x128xf32> to vector<8x128xbf16>
    %cst_14 = arith.constant dense<0.000000e+00> : vector<1x8xf32>
    %19 = tpu.matmul %17, %18, %cst_14 {dimension_numbers = #tpu.dot_dimension_numbers<[1], [1], [0], [0], [0, 0, 1, 0], [], []>} : vector<1x128xbf16>, vector<8x128xbf16>, vector<1x8xf32> -> vector<1x8xf32>
    %c0_15 = arith.constant 0 : index
    %c0_16 = arith.constant 0 : index
    %20 = vector.load %arg7[%c0_15, %c0_16] : memref<1x1xf32, #tpu.memory_space<vmem>>, vector<1x1xf32>
    %21 = vector.broadcast %20 : vector<1x1xf32> to vector<1x8xf32>
    %22 = arith.addf %19, %21 : vector<1x8xf32>
    %23 = vector.shape_cast %22 : vector<1x8xf32> to vector<1x1x8xf32>
    %c0_17 = arith.constant 0 : index
    %c0_18 = arith.constant 0 : index
    %c0_19 = arith.constant 0 : index
    %24 = vector.load %arg8[%c0_17, %c0_18, %c0_19] : memref<1x1x8xf32, #tpu.memory_space<vmem>>, vector<1x1x8xf32>
    tpu.vector_store %arg8[%c0_17, %c0_18, %c0_19], %23 {strides = array<i32>} : memref<1x1x8xf32, #tpu.memory_space<vmem>>, vector<1x1x8xf32>,
    return
  }
  func.func @transform_0(%arg0: i32) -> (i32, i32) {
    %c0_i32 = arith.constant 0 : i32
    %c0_i32_0 = arith.constant 0 : i32
    return %arg0, %c0_i32 : i32, i32
  }
  func.func @transform_1(%arg0: i32) -> (i32, i32) {
    %c0_i32 = arith.constant 0 : i32
    %c0_i32_0 = arith.constant 0 : i32
    %c0_i32_1 = arith.constant 0 : i32
    return %c0_i32, %c0_i32_0 : i32, i32
  }
  func.func @transform_2(%arg0: i32) -> (i32, i32) {
    %c0_i32 = arith.constant 0 : i32
    %c0_i32_0 = arith.constant 0 : i32
    %c0_i32_1 = arith.constant 0 : i32
    return %c0_i32, %c0_i32_0 : i32, i32
  }
  func.func @transform_3(%arg0: i32) -> (i32, i32) {
    %c0_i32 = arith.constant 0 : i32
    %c0_i32_0 = arith.constant 0 : i32
    %c0_i32_1 = arith.constant 0 : i32
    return %c0_i32, %c0_i32_0 : i32, i32
  }
  func.func @transform_4(%arg0: i32) -> (i32, i32) {
    %c0_i32 = arith.constant 0 : i32
    %c0_i32_0 = arith.constant 0 : i32
    %c0_i32_1 = arith.constant 0 : i32
    return %c0_i32, %c0_i32_0 : i32, i32
  }
  func.func @transform_5(%arg0: i32) -> (i32, i32) {
    %c0_i32 = arith.constant 0 : i32
    %c0_i32_0 = arith.constant 0 : i32
    %c0_i32_1 = arith.constant 0 : i32
    return %c0_i32, %c0_i32_0 : i32, i32
  }
  func.func @transform_6(%arg0: i32) -> (i32, i32) {
    %c0_i32 = arith.constant 0 : i32
    %c0_i32_0 = arith.constant 0 : i32
    %c0_i32_1 = arith.constant 0 : i32
    return %c0_i32, %c0_i32_0 : i32, i32
  }
  func.func @transform_7(%arg0: i32) -> (i32, i32, i32) {
    %c0_i32 = arith.constant 0 : i32
    %c0_i32_0 = arith.constant 0 : i32
    %c0_i32_1 = arith.constant 0 : i32
    return %arg0, %c0_i32, %c0_i32_0 : i32, i32, i32
  }
}

</mosaic_0001>

<llo_original>
// kernel: tpu_custom_call.1
$region0: #{tpu_custom_call.1}
  #allocation0 [shape = 'u32[]', space=smem, size = 0x4, offset = 0x4, fixed_abs, tag = 'smem constant byte address 0x4 - core index']
  #allocation1 [shape = 'u32[144,128]{1,0:T(1,128)}', space=vmem, size = 0x12000, scoped, tag = 'internal scratch']
  #allocation2 [shape = 'f32[1,1]{1,0:T(1,128)S(1)}', space=vmem, size = 0x200, scoped, tag = 'scoped memory for tpu_custom_call.1']
  %s0 = inlined_call_operand.vmem [shape: f32[8,4], index: 0, kind: input, shape index: {}]
  %s1 = inlined_call_operand.vmem [shape: bf16[4,128], index: 1, kind: input, shape index: {}]
  %s2 = inlined_call_operand.vmem [shape: f32[1,128], index: 2, kind: input, shape index: {}]
  %s3 = inlined_call_operand.hbm [shape: bf16[128,128], index: 3, kind: input, shape index: {}]
  %s4 = inlined_call_operand.vmem [shape: f32[1,128], index: 4, kind: input, shape index: {}]
  %s5 = inlined_call_operand.vmem [shape: bf16[1,128], index: 5, kind: input, shape index: {}]
  %s6 = inlined_call_operand.<no memory space> [shape: f32[1,1], index: 6, kind: input, shape index: {}]
  %s7 = inlined_call_operand.hbm [shape: f32[1,1,8], index: 7, kind: output, shape index: {}]
  %s8 = sld [smem:[#allocation0]]
  $region42: #{tpu_custom_call.1} parent=0
    _
  %s10 = ssub.s32 1, %s8
  %s11 = scalar_select 0, %s10, %s8
  %v12 = vstv %s6
  %13 = vst [vmem:[#allocation2] sm:$0x1] %v12
  $region1: #{tpu_custom_call.1} parent=0
    #allocation3 [shape = 'u8[32768]{0}', space=vmem, size = 0x8000, scoped, tag = 'input window, operand 3, single buffered']
    #allocation4 [shape = 's32[1]{0}', space=sflag, size = 0x4, scoped, tag = 'scoped memory for tpu_custom_call.1']
    #allocation5 [shape = 's32[1]{0}', space=sflag, size = 0x4, scoped, tag = 'scoped memory for tpu_custom_call.1']
    #allocation6 [shape = 'u8[512]{0}', space=vmem, size = 0x400, scoped, tag = 'output window, operand 0, single buffered']
    %14 = vsyncpa [#allocation4], 0
    %15 = vsyncpa [#allocation5], 0
    // Predicated region
    $region2: #{tpu_custom_call.1} parent=1 // pred_check
      _
    $region3: #{tpu_custom_call.1} parent=1 // pred_check_branch
      %17 = sbr.rel (0) target = $region5
    $region4: #{tpu_custom_call.1} parent=1 // pred_region
      _
    $region5: #{tpu_custom_call.1} parent=1 // pred_fallthru
      _
    // Predicated region
    $region6: #{tpu_custom_call.1} parent=1 // pred_check
      _
    $region7: #{tpu_custom_call.1} parent=1 // pred_check_branch
      %19 = sbr.rel (0) target = $region9
    $region8: #{tpu_custom_call.1} parent=1 // pred_region
      _
    $region9: #{tpu_custom_call.1} parent=1 // pred_fallthru
      _
    // Predicated region
    $region10: #{tpu_custom_call.1} parent=1 // pred_check
      _
    $region11: #{tpu_custom_call.1} parent=1 // pred_check_branch
      %21 = sbr.rel (0) target = $region13
    $region12: #{tpu_custom_call.1} parent=1 // pred_region
      _
    $region13: #{tpu_custom_call.1} parent=1 // pred_fallthru
      _
    // Predicated region
    $region14: #{tpu_custom_call.1} parent=1 // pred_check
      _
    $region15: #{tpu_custom_call.1} parent=1 // pred_check_branch
      %23 = sbr.rel (0) target = $region17
    $region16: #{tpu_custom_call.1} parent=1 // pred_region
      %s25 = ssub.s32 1024, 1024
      %26 = vsyncadd [#allocation4], %s25
      %s27 = sshll.u32 [#allocation3], 4
      %s28 = int_to_ptr.vmem [resolvable:$true] %s27
      %33 = dma.hbm_to_vmem [thread:$0]  %s3, 1024, %s28, [#allocation4], 64, 64, 4
    $region17: #{tpu_custom_call.1} parent=1 // pred_fallthru
      _
    // Predicated region
    $region18: #{tpu_custom_call.1} parent=1 // pred_check
      _
    $region19: #{tpu_custom_call.1} parent=1 // pred_check_branch
      %35 = sbr.rel (0) target = $region21
    $region20: #{tpu_custom_call.1} parent=1 // pred_region
      _
    $region21: #{tpu_custom_call.1} parent=1 // pred_fallthru
      _
    // Predicated region
    $region22: #{tpu_custom_call.1} parent=1 // pred_check
      _
    $region23: #{tpu_custom_call.1} parent=1 // pred_check_branch
      %37 = sbr.rel (0) target = $region25
    $region24: #{tpu_custom_call.1} parent=1 // pred_region
      _
    $region25: #{tpu_custom_call.1} parent=1 // pred_fallthru
      _
    // Predicated region
    $region26: #{tpu_custom_call.1} parent=1 // pred_check
      _
    $region27: #{tpu_custom_call.1} parent=1 // pred_check_branch
      %39 = sbr.rel (0) target = $region29
    $region28: #{tpu_custom_call.1} parent=1 // pred_region
      _
    $region29: #{tpu_custom_call.1} parent=1 // pred_fallthru
      _
    // Predicated region
    $region30: #{tpu_custom_call.1} parent=1 // pred_check
      _
    $region31: #{tpu_custom_call.1} parent=1 // pred_check_branch
      %41 = sbr.rel (0) target = $region33
    $region32: #{tpu_custom_call.1} parent=1 // pred_region
      %42 = dma.done [#allocation4], 1024
    $region33: #{tpu_custom_call.1} parent=1 // pred_fallthru
      _
    %v44 = vld [vmem:[%s0] sm:$0xff]
    %v45 = vpack.c.bf16 %v44, %v44
    %v46 = vld [vmem:[%s1] sm:$0x3]
    %v47 = vld [vmem:[%s2] sm:$0x1]
    %v49 = vlaneseq
    %v50 = vshrl.u32 %v49, 7
    %v51 = vsub.s32 0, %v50
    %v52 = vrot.slane %v47, %v51
    %vm54 = vcmask 31744
    %v56 = vsel %vm54, %v45, 0
    %vm58 = vcmask 1041408
    %v60 = vsel %vm58, %v46, 0
    %62 = vmatprep.subr.bf16.mxu0 0
    %63 = vmatpush1.bf16.msra.mxu0 0
    %64 = vmatprep.subr.bf16.mxu0 0
    %65 = vmatpush1.bf16.msra.mxu0 0
    %66 = vmatprep.subr.bf16.mxu0 0
    %67 = vmatpush1.bf16.msra.mxu0 0
    %68 = vmatprep.subr.bf16.mxu0 0
    %69 = vmatpush1.bf16.msra.mxu0 0
    %70 = vmatprep.subr.bf16.mxu0 0
    %71 = vmatpush1.bf16.msra.mxu0 0
    %72 = vmatprep.subr.bf16.mxu0 0
    %73 = vmatpush1.bf16.msra.mxu0 0
    %74 = vmatprep.subr.bf16.mxu0 0
    %75 = vmatpush1.bf16.msra.mxu0 0
    %76 = vmatprep.subr.bf16.mxu0 0
    %77 = vmatpush1.bf16.msra.mxu0 %v60
    %78 = vmatprep.subr.bf16.mxu0 0
    %79 = vmatpush2.bf16.msra.mxu0 0
    %80 = vmatprep.subr.bf16.mxu0 0
    %81 = vmatpush2.bf16.msra.mxu0 0
    %82 = vmatprep.subr.bf16.mxu0 0
    %83 = vmatpush2.bf16.msra.mxu0 0
    %84 = vmatprep.subr.bf16.mxu0 0
    %85 = vmatpush2.bf16.msra.mxu0 0
    %86 = vmatprep.subr.bf16.mxu0 0
    %87 = vmatpush2.bf16.msra.mxu0 0
    %88 = vmatprep.subr.bf16.mxu0 0
    %89 = vmatpush2.bf16.msra.mxu0 0
    %90 = vmatprep.subr.bf16.mxu0 0
    %91 = vmatpush2.bf16.msra.mxu0 0
    %92 = vmatprep.subr.bf16.mxu0 0
    %93 = vmatpush2.bf16.msra.mxu0 0
    %94 = vmatprep.mubr.bf16.mxu0 0
    %95 = vmatmul.mubr.bf16.gmra.mxu0 %v56
    %v96 = vpop.f32.mrf.mxu0
    %v97 = vadd.f32 %v52, %v96
    %v98 = vpop.f32.mrf.mxu0
    %v99 = vpop.f32.mrf.mxu0
    %v100 = vpop.f32.mrf.mxu0
    %101 = vdwg.mxu0
    %v102 = vmax.f32 %v97, 0.0
    %v103 = vpack.c.bf16 %v102, %v102
    %v104 = vld [vmem:[#allocation3] sm:$0xf]
    %v105 = vld [vmem:[#allocation3 + $0x4] sm:$0xf]
    %v106 = vld [vmem:[#allocation3 + $0x8] sm:$0xf]
    %v107 = vld [vmem:[#allocation3 + $0xc] sm:$0xf]
    %v108 = vld [vmem:[#allocation3 + $0x10] sm:$0xf]
    %v109 = vld [vmem:[#allocation3 + $0x14] sm:$0xf]
    %v110 = vld [vmem:[#allocation3 + $0x18] sm:$0xf]
    %v111 = vld [vmem:[#allocation3 + $0x1c] sm:$0xf]
    %v112 = vld [vmem:[#allocation3 + $0x20] sm:$0xf]
    %v113 = vld [vmem:[#allocation3 + $0x24] sm:$0xf]
    %v114 = vld [vmem:[#allocation3 + $0x28] sm:$0xf]
    %v115 = vld [vmem:[#allocation3 + $0x2c] sm:$0xf]
    %v116 = vld [vmem:[#allocation3 + $0x30] sm:$0xf]
    %v117 = vld [vmem:[#allocation3 + $0x34] sm:$0xf]
    %v118 = vld [vmem:[#allocation3 + $0x38] sm:$0xf]
    %v119 = vld [vmem:[#allocation3 + $0x3c] sm:$0xf]
    %v120 = vld [vmem:[%s4] sm:$0x1]
    %v122 = vlaneseq
    %v123 = vshrl.u32 %v122, 7
    %v124 = vsub.s32 0, %v123
    %v125 = vrot.slane %v120, %v124
    %v143 = vunpack.c.l.b16 %v104
    %v144 = vunpack.c.l.b16 %v105
    %v145 = vunpack.c.l.b16 %v106
    %v146 = vunpack.c.l.b16 %v107
    %v147 = vunpack.c.l.b16 %v108
    %v148 = vunpack.c.l.b16 %v109
    %v149 = vunpack.c.l.b16 %v110
    %v150 = vunpack.c.l.b16 %v111
    %v151 = vunpack.c.l.b16 %v112
    %v152 = vunpack.c.l.b16 %v113
    %v153 = vunpack.c.l.b16 %v114
    %v154 = vunpack.c.l.b16 %v115
    %v155 = vunpack.c.l.b16 %v116
    %v156 = vunpack.c.l.b16 %v117
    %v157 = vunpack.c.l.b16 %v118
    %v158 = vunpack.c.l.b16 %v119
    %v159 = vpack.c.b16 %v144, %v143
    %v160 = vpack.c.b16 %v146, %v145
    %v161 = vpack.c.b16 %v148, %v147
    %v162 = vpack.c.b16 %v150, %v149
    %v163 = vpack.c.b16 %v152, %v151
    %v164 = vpack.c.b16 %v154, %v153
    %v165 = vpack.c.b16 %v156, %v155
    %v166 = vpack.c.b16 %v158, %v157
    %175 = vmatprep.subr.bf16.mxu0 0
    %176 = vmatpush1.bf16.msra.mxu0 %v166
    %177 = vmatprep.subr.bf16.mxu0 0
    %178 = vmatpush1.bf16.msra.mxu0 %v165
    %179 = vmatprep.subr.bf16.mxu0 0
    %180 = vmatpush1.bf16.msra.mxu0 %v164
    %181 = vmatprep.subr.bf16.mxu0 0
    %182 = vmatpush1.bf16.msra.mxu0 %v163
    %183 = vmatprep.subr.bf16.mxu0 0
    %184 = vmatpush1.bf16.msra.mxu0 %v162
    %185 = vmatprep.subr.bf16.mxu0 0
    %186 = vmatpush1.bf16.msra.mxu0 %v161
    %187 = vmatprep.subr.bf16.mxu0 0
    %188 = vmatpush1.bf16.msra.mxu0 %v160
    %189 = vmatprep.subr.bf16.mxu0 0
    %190 = vmatpush1.bf16.msra.mxu0 %v159
    %191 = vmatprep.subr.bf16.mxu0 0
    %192 = vmatpush2.bf16.msra.mxu0 0
    %193 = vmatprep.subr.bf16.mxu0 0
    %194 = vmatpush2.bf16.msra.mxu0 0
    %195 = vmatprep.subr.bf16.mxu0 0
    %196 = vmatpush2.bf16.msra.mxu0 0
    %197 = vmatprep.subr.bf16.mxu0 0
    %198 = vmatpush2.bf16.msra.mxu0 0
    %199 = vmatprep.subr.bf16.mxu0 0
    %200 = vmatpush2.bf16.msra.mxu0 0
    %201 = vmatprep.subr.bf16.mxu0 0
    %202 = vmatpush2.bf16.msra.mxu0 0
    %203 = vmatprep.subr.bf16.mxu0 0
    %204 = vmatpush2.bf16.msra.mxu0 0
    %205 = vmatprep.subr.bf16.mxu0 0
    %206 = vmatpush2.bf16.msra.mxu0 0
    %207 = vmatprep.mubr.bf16.mxu0 0
    %208 = vmatmul.mubr.bf16.gmra.mxu0 %v103
    %v209 = vpop.f32.mrf.mxu0
    %v210 = vadd.f32 %v125, %v209
    %v211 = vpop.f32.mrf.mxu0
    %v212 = vpop.f32.mrf.mxu0
    %v213 = vpop.f32.mrf.mxu0
    %214 = vdwg.mxu0
    %v215 = vmax.f32 %v210, 0.0
    %v216 = vld [vmem:[%s5] sm:$0x1]
    %v217 = vpack.c.bf16 %v215, %v215
    %v218 = vld [vmem:[#allocation2] sm:$0x1]
    %220 = vset.pattern.permute.xlu0 0
    %221 = vperm.xlu0 %220, %v218
    %v222 = vpop.permute.xlu0 %221
    %v224 = vlaneseq
    %v225 = vshrl.u32 %v224, 7
    %v226 = vsub.s32 0, %v225
    %v227 = vrot.slane %v222, %v226
    %228 = vmatprep.subr.bf16.mxu0 0
    %229 = vmatpush1.bf16.xpose.msra.mxu0 0
    %230 = vmatprep.subr.bf16.mxu0 0
    %231 = vmatpush1.bf16.xpose.msra.mxu0 0
    %232 = vmatprep.subr.bf16.mxu0 0
    %233 = vmatpush1.bf16.xpose.msra.mxu0 0
    %234 = vmatprep.subr.bf16.mxu0 0
    %235 = vmatpush1.bf16.xpose.msra.mxu0 0
    %236 = vmatprep.subr.bf16.mxu0 0
    %237 = vmatpush1.bf16.xpose.msra.mxu0 0
    %238 = vmatprep.subr.bf16.mxu0 0
    %239 = vmatpush1.bf16.xpose.msra.mxu0 0
    %240 = vmatprep.subr.bf16.mxu0 0
    %241 = vmatpush1.bf16.xpose.msra.mxu0 0
    %242 = vmatprep.subr.bf16.mxu0 0
    %243 = vmatpush1.bf16.xpose.msra.mxu0 %v217
    %244 = vmatprep.subr.bf16.mxu0 0
    %245 = vmatpush2.bf16.xpose.msra.mxu0 0
    %246 = vmatprep.subr.bf16.mxu0 0
    %247 = vmatpush2.bf16.xpose.msra.mxu0 0
    %248 = vmatprep.subr.bf16.mxu0 0
    %249 = vmatpush2.bf16.xpose.msra.mxu0 0
    %250 = vmatprep.subr.bf16.mxu0 0
    %251 = vmatpush2.bf16.xpose.msra.mxu0 0
    %252 = vmatprep.subr.bf16.mxu0 0
    %253 = vmatpush2.bf16.xpose.msra.mxu0 0
    %254 = vmatprep.subr.bf16.mxu0 0
    %255 = vmatpush2.bf16.xpose.msra.mxu0 0
    %256 = vmatprep.subr.bf16.mxu0 0
    %257 = vmatpush2.bf16.xpose.msra.mxu0 0
    %258 = vmatprep.subr.bf16.mxu0 0
    %259 = vmatpush2.bf16.xpose.msra.mxu0 0
    %260 = vmatprep.mubr.bf16.mxu0 0
    %261 = vmatmul.mubr.bf16.gmra.mxu0 %v216
    %v262 = vpop.f32.mrf.mxu0
    %v263 = vadd.f32 %v227, %v262
    %v264 = vpop.f32.mrf.mxu0
    %v265 = vpop.f32.mrf.mxu0
    %v266 = vpop.f32.mrf.mxu0
    %267 = vdwg.mxu0
    %vm268 = vcmask 57344
    %269 = vst.msk [vmem:[#allocation6] sm:$0x1] %vm268, %v263
    // Predicated region
    $region34: #{tpu_custom_call.1} parent=1 // pred_check
      _
    $region35: #{tpu_custom_call.1} parent=1 // pred_check_branch
      %271 = sbr.rel (0) target = $region37
    $region36: #{tpu_custom_call.1} parent=1 // pred_region
      %s273 = ssub.s32 16, 16
      %274 = vsyncadd [#allocation5], %s273
      %s276 = sshll.u32 [#allocation6], 4
      %s277 = int_to_ptr.vmem [resolvable:$true] %s276
      %279 = dma.vmem_to_hbm [thread:$0]  %s277, 16, %s7, [#allocation5]
    $region37: #{tpu_custom_call.1} parent=1 // pred_fallthru
      _
    // Predicated region
    $region38: #{tpu_custom_call.1} parent=1 // pred_check
      _
    $region39: #{tpu_custom_call.1} parent=1 // pred_check_branch
      %281 = sbr.rel (0) target = $region41
    $region40: #{tpu_custom_call.1} parent=1 // pred_region
      %282 = dma.done [#allocation5], 16
    $region41: #{tpu_custom_call.1} parent=1 // pred_fallthru
      _
    %283 = vsyncpa [#allocation4], 1
    %284 = vsyncpa [#allocation5], 1

</llo_original>
